<compile_context>
chip_gen: v7x
topology: tpu7x:2x2x1
jax: 0.10.0
libtpu: 0.0.40
codegen_flags: <defaults>
</compile_context>

<pallas_src>
import jax
import jax.numpy as jnp
from jax.experimental import pallas as pl
from jax.experimental.pallas import tpu as pltpu

IN_DIM = 512
HID_DIM = 512
OUT_DIM = 1


def fcnet_kernel(x_ref, w1_ref, b1_ref, w2_ref, b2_ref, o_ref):
    # x_ref:  (TB, 512)  f32  VMEM   batch tile (cast to bf16 in-kernel)
    # w1_ref: (512, 512) bf16 VMEM   resident across grid steps
    # b1_ref: (1, 512)   f32  VMEM
    # w2_ref: (1, 512)   f32  VMEM   fc2 weight as a row vector
    # b2_ref: (1, 1)     f32  SMEM   scalar bias
    # o_ref:  (TB, 1)    f32  VMEM
    # In-kernel f32 -> bf16 cast (VPU, hidden under MXU); fc1 on the MXU with
    # f32 accumulation.
    x_bf = x_ref[...].astype(jnp.bfloat16)
    h = jnp.dot(x_bf, w1_ref[...], preferred_element_type=jnp.float32)
    h = jnp.maximum(h + b1_ref[...], 0.0)

    # Dropout(p=0.5) is identity in eval/inference mode.
    # TODO(synk): training-mode dropout would use pltpu.prng_seed + prng_random_bits.

    # fc2 (512 -> 1): VPU multiply + cross-lane reduce (XLU). Keeps the MXU
    # critical path short on v5e; VALU/XLU work hides under MXU on v6e/v7x.
    z = jnp.sum(h * w2_ref[...], axis=-1, keepdims=True) + b2_ref[0, 0]
    o_ref[...] = jax.nn.sigmoid(z).astype(o_ref.dtype)


def _round_up(v, m):
    return ((v + m - 1) // m) * m


def prepare_params(w1, b1, w2, b2):
    """One-time parameter preprocessing (hoisted out of the per-call path).

    Params are in (in, out) layout: w1 (512,512), b1 (512,), w2 (512,1), b2 (1,).
    """
    w1_bf = w1.astype(jnp.bfloat16)                       # MXU operand
    b1_row = b1.reshape(1, HID_DIM).astype(jnp.float32)
    w2_row = w2.reshape(1, HID_DIM).astype(jnp.float32)   # (512,1) -> (1,512)
    b2_sc = b2.reshape(1, 1).astype(jnp.float32)
    return w1_bf, b1_row, w2_row, b2_sc


def fcnet_forward(x, w1_bf, b1_row, w2_row, b2_sc, *, tile_b=2048):
    """x: [B, 512] f32; params from prepare_params().
    Returns sigmoid(fc2(relu(fc1(x)))) flattened to [B] f32."""
    B = x.shape[0]

    if B <= 256:
        # Single tile; block_shape == full array dim is always legal.
        tb = B
    else:
        # >= 2 grid steps so both v7x TensorCores get work; tiles are a multiple
        # of 256 sublanes, capped at tile_b. Ragged last tile is handled by
        # Pallas boundary masking (no wrapper-side jnp.pad of x).
        tb = min(tile_b, _round_up(pl.cdiv(B, 2), 256))
    grid = (pl.cdiv(B, tb),)

    out = pl.pallas_call(
        fcnet_kernel,
        out_shape=jax.ShapeDtypeStruct((B, OUT_DIM), jnp.float32),
        grid_spec=pltpu.PrefetchScalarGridSpec(
            num_scalar_prefetch=0,
            grid=grid,
            in_specs=[
                pl.BlockSpec((tb, IN_DIM), lambda i: (i, 0)),           # x tile (f32)
                pl.BlockSpec((IN_DIM, HID_DIM), lambda i: (0, 0)),      # W1 (resident)
                pl.BlockSpec((1, HID_DIM), lambda i: (0, 0)),           # b1
                pl.BlockSpec((1, HID_DIM), lambda i: (0, 0)),           # w2 row
                pl.BlockSpec(memory_space=pltpu.MemorySpace.SMEM),      # b2 scalar
            ],
            out_specs=pl.BlockSpec((tb, OUT_DIM), lambda i: (i, 0)),
        ),
        compiler_params=pltpu.CompilerParams(
            # Batch tiles are independent -> shard across TCs on v7x.
            dimension_semantics=("parallel",),
            # Headroom for the 2048-row f32 x tile (double-buffered) + f32
            # intermediates; comfortably under v7x's 64 MiB physical VMEM.
            vmem_limit_bytes=48 * 1024 * 1024,
        ),
    )(x, w1_bf, b1_row, w2_row, b2_sc)

    # torch.flatten on [B, 1] -> [B].
    return out[:, 0]


def init_params(key):
    """PyTorch-Linear-style init, stored transposed as (in, out)."""
    k1, k2, k3, k4 = jax.random.split(key, 4)
    bound1 = 1.0 / jnp.sqrt(IN_DIM)
    bound2 = 1.0 / jnp.sqrt(HID_DIM)
    w1 = jax.random.uniform(k1, (IN_DIM, HID_DIM), jnp.float32, -bound1, bound1)
    b1 = jax.random.uniform(k2, (HID_DIM,), jnp.float32, -bound1, bound1)
    w2 = jax.random.uniform(k3, (HID_DIM, OUT_DIM), jnp.float32, -bound2, bound2)
    b2 = jax.random.uniform(k4, (OUT_DIM,), jnp.float32, -bound2, bound2)
    return w1, b1, w2, b2


def _reference(x, w1, b1, w2, b2):
    h = jnp.maximum(x @ w1 + b1, 0.0)
    return jax.nn.sigmoid(h @ w2 + b2).reshape(x.shape[0])


if __name__ == "__main__":
    key = jax.random.PRNGKey(0)
    kx, kp, kx2 = jax.random.split(key, 3)
    w1, b1, w2, b2 = init_params(kp)
    w1_bf, b1_row, w2_row, b2_sc = prepare_params(w1, b1, w2, b2)

    # Primary small run (matches the module's expected [B, 512] input).
    B = 8
    x = jax.random.normal(kx, (B, IN_DIM), jnp.float32)
    y = fcnet_forward(x, w1_bf, b1_row, w2_row, b2_sc)
    jax.block_until_ready(y)
    y_ref = _reference(x, w1, b1, w2, b2)
    assert y.shape == (B,)
    assert jnp.allclose(y, y_ref, atol=2e-2, rtol=0.0), \
        f"max err {jnp.max(jnp.abs(y - y_ref))}"

    # Secondary check: non-multiple-of-tile batch -> 2-step grid with a ragged
    # last tile (exercises boundary masking + the v7x two-TC split path).
    B2 = 300
    x2 = jax.random.normal(kx2, (B2, IN_DIM), jnp.float32)
    y2 = fcnet_forward(x2, w1_bf, b1_row, w2_row, b2_sc)
    jax.block_until_ready(y2)
    y2_ref = _reference(x2, w1, b1, w2, b2)
    assert y2.shape == (B2,)
    assert jnp.allclose(y2, y2_ref, atol=2e-2, rtol=0.0), \
        f"max err {jnp.max(jnp.abs(y2 - y2_ref))}"

    print("KERNEL_OK")
</pallas_src>

<mosaic_0001>
module attributes {stable_mosaic.version = 11 : i64} {
  func.func @fcnet_kernel(%arg0: i32, %arg1: memref<8x512xf32, #tpu.memory_space<vmem>>, %arg2: memref<512x512xbf16, #tpu.memory_space<vmem>>, %arg3: memref<1x512xf32, #tpu.memory_space<vmem>>, %arg4: memref<1x512xf32, #tpu.memory_space<vmem>>, %arg5: memref<1x1xf32, #tpu.memory_space<smem>>, %arg6: memref<8x1xf32, #tpu.memory_space<vmem>>) attributes {dimension_semantics = [#tpu.dimension_semantics<parallel>], iteration_bounds = array<i64: 1>, scalar_prefetch = 0 : i64, scratch_operands = 0 : i64, tpu.core_type = #tpu.core_type<tc>, window_params = [{transform_indices = @transform_0, window_bounds = array<i64: 8, 512>}, {pipeline_mode = #tpu.pipeline_mode<synchronous>, transform_indices = @transform_1, window_bounds = array<i64: 512, 512>}, {pipeline_mode = #tpu.pipeline_mode<synchronous>, transform_indices = @transform_2, window_bounds = array<i64: 1, 512>}, {pipeline_mode = #tpu.pipeline_mode<synchronous>, transform_indices = @transform_3, window_bounds = array<i64: 1, 512>}, {transform_indices = @transform_4, window_bounds = array<i64: 1, 1>}, {transform_indices = @transform_5, window_bounds = array<i64: 8, 1>}]} {
    %c0 = arith.constant 0 : index
    %c0_0 = arith.constant 0 : index
    %0 = vector.load %arg1[%c0, %c0_0] : memref<8x512xf32, #tpu.memory_space<vmem>>, vector<8x512xf32>
    %1 = arith.truncf %0 : vector<8x512xf32> to vector<8x512xbf16>
    %c0_1 = arith.constant 0 : index
    %c0_2 = arith.constant 0 : index
    %2 = vector.load %arg2[%c0_1, %c0_2] : memref<512x512xbf16, #tpu.memory_space<vmem>>, vector<512x512xbf16>
    %cst = arith.constant dense<0.000000e+00> : vector<8x512xf32>
    %3 = tpu.matmul %1, %2, %cst {dimension_numbers = #tpu.dot_dimension_numbers<[1], [0], [0], [1], [0, 0, 1, 1], [], []>} : vector<8x512xbf16>, vector<512x512xbf16>, vector<8x512xf32> -> vector<8x512xf32>
    %c0_3 = arith.constant 0 : index
    %c0_4 = arith.constant 0 : index
    %4 = vector.load %arg3[%c0_3, %c0_4] : memref<1x512xf32, #tpu.memory_space<vmem>>, vector<1x512xf32>
    %5 = vector.broadcast %4 : vector<1x512xf32> to vector<8x512xf32>
    %6 = arith.addf %3, %5 : vector<8x512xf32>
    %cst_5 = arith.constant 0.000000e+00 : f32
    %7 = vector.broadcast %cst_5 : f32 to vector<8x512xf32>
    %8 = arith.maximumf %6, %7 : vector<8x512xf32>
    %c0_6 = arith.constant 0 : index
    %c0_7 = arith.constant 0 : index
    %9 = vector.load %arg4[%c0_6, %c0_7] : memref<1x512xf32, #tpu.memory_space<vmem>>, vector<1x512xf32>
    %10 = vector.broadcast %9 : vector<1x512xf32> to vector<8x512xf32>
    %11 = arith.mulf %8, %10 : vector<8x512xf32>
    %cst_8 = arith.constant dense<0.000000e+00> : vector<8xf32>
    %12 = vector.multi_reduction <add>, %11, %cst_8 [1] : vector<8x512xf32> to vector<8xf32>
    %13 = vector.shape_cast %12 : vector<8xf32> to vector<8x1xf32>
    %c0_9 = arith.constant 0 : index
    %c0_10 = arith.constant 0 : index
    %14 = memref.load %arg5[%c0_9, %c0_10] : memref<1x1xf32, #tpu.memory_space<smem>>
    %15 = vector.broadcast %14 : f32 to vector<8x1xf32>
    %16 = arith.addf %13, %15 : vector<8x1xf32>
    %17 = arith.negf %16 : vector<8x1xf32>
    %18 = math.exp %17 : vector<8x1xf32>
    %cst_11 = arith.constant 1.000000e+00 : f32
    %19 = vector.broadcast %cst_11 : f32 to vector<8x1xf32>
    %20 = arith.addf %19, %18 : vector<8x1xf32>
    %21 = arith.divf %19, %20 : vector<8x1xf32>
    %c0_12 = arith.constant 0 : index
    %c0_13 = arith.constant 0 : index
    %22 = vector.load %arg6[%c0_12, %c0_13] : memref<8x1xf32, #tpu.memory_space<vmem>>, vector<8x1xf32>
    tpu.vector_store %arg6[%c0_12, %c0_13], %21 {strides = array<i32>} : memref<8x1xf32, #tpu.memory_space<vmem>>, vector<8x1xf32>,
    return
  }
  func.func @transform_0(%arg0: i32) -> (i32, i32) {
    %c0_i32 = arith.constant 0 : i32
    %c0_i32_0 = arith.constant 0 : i32
    return %arg0, %c0_i32 : i32, i32
  }
  func.func @transform_1(%arg0: i32) -> (i32, i32) {
    %c0_i32 = arith.constant 0 : i32
    %c0_i32_0 = arith.constant 0 : i32
    %c0_i32_1 = arith.constant 0 : i32
    return %c0_i32, %c0_i32_0 : i32, i32
  }
  func.func @transform_2(%arg0: i32) -> (i32, i32) {
    %c0_i32 = arith.constant 0 : i32
    %c0_i32_0 = arith.constant 0 : i32
    %c0_i32_1 = arith.constant 0 : i32
    return %c0_i32, %c0_i32_0 : i32, i32
  }
  func.func @transform_3(%arg0: i32) -> (i32, i32) {
    %c0_i32 = arith.constant 0 : i32
    %c0_i32_0 = arith.constant 0 : i32
    %c0_i32_1 = arith.constant 0 : i32
    return %c0_i32, %c0_i32_0 : i32, i32
  }
  func.func @transform_4(%arg0: i32) -> (i32, i32) {
    %c0_i32 = arith.constant 0 : i32
    %c0_i32_0 = arith.constant 0 : i32
    %c0_i32_1 = arith.constant 0 : i32
    return %c0_i32, %c0_i32_0 : i32, i32
  }
  func.func @transform_5(%arg0: i32) -> (i32, i32) {
    %c0_i32 = arith.constant 0 : i32
    %c0_i32_0 = arith.constant 0 : i32
    return %arg0, %c0_i32 : i32, i32
  }
}

</mosaic_0001>

<llo_original>
// kernel: tpu_custom_call.1
$region0: #{tpu_custom_call.1}
  #allocation0 [shape = 'u32[]', space=smem, size = 0x4, offset = 0x4, fixed_abs, tag = 'smem constant byte address 0x4 - core index']
  #allocation1 [shape = 'u32[144,128]{1,0:T(1,128)}', space=vmem, size = 0x12000, scoped, tag = 'internal scratch']
  #allocation2 [shape = 'f32[1,1]{1,0:T(1,128)S(6)}', space=smem, size = 0x200, scoped, tag = 'scoped memory for tpu_custom_call.1']
  %s0 = inlined_call_operand.hbm [shape: f32[8,512], index: 0, kind: input, shape index: {}]
  %s1 = inlined_call_operand.hbm [shape: bf16[512,512], index: 1, kind: input, shape index: {}]
  %s2 = inlined_call_operand.vmem [shape: f32[1,512], index: 2, kind: input, shape index: {}]
  %s3 = inlined_call_operand.vmem [shape: f32[1,512], index: 3, kind: input, shape index: {}]
  %s4 = inlined_call_operand.<no memory space> [shape: f32[1,1], index: 4, kind: input, shape index: {}]
  %s5 = inlined_call_operand.vmem [shape: f32[8,1], index: 5, kind: output, shape index: {}]
  %s6 = sld [smem:[#allocation0]]
  $region38: #{tpu_custom_call.1} parent=0
    _
  %s8 = ssub.s32 1, %s6
  %s9 = scalar_select 0, %s8, %s6
  %10 = sst [smem:[#allocation2]] %s4
  $region1: #{tpu_custom_call.1} parent=0
    #allocation3 [shape = 'u8[16384]{0}', space=vmem, size = 0x4000, scoped, tag = 'input window, operand 0, single buffered']
    #allocation4 [shape = 's32[1]{0}', space=sflag, size = 0x4, scoped, tag = 'scoped memory for tpu_custom_call.1']
    #allocation5 [shape = 'u8[524288]{0}', space=vmem, size = 0x80000, scoped, tag = 'input window, operand 1, single buffered']
    #allocation6 [shape = 's32[1]{0}', space=sflag, size = 0x4, scoped, tag = 'scoped memory for tpu_custom_call.1']
    %11 = vsyncpa [#allocation4], 0
    %12 = vsyncpa [#allocation6], 0
    // Predicated region
    $region2: #{tpu_custom_call.1} parent=1 // pred_check
      _
    $region3: #{tpu_custom_call.1} parent=1 // pred_check_branch
      %14 = sbr.rel (0) target = $region5
    $region4: #{tpu_custom_call.1} parent=1 // pred_region
      %s16 = ssub.s32 512, 512
      %17 = vsyncadd [#allocation4], %s16
      %s19 = sshll.u32 [#allocation3], 4
      %s20 = int_to_ptr.vmem [resolvable:$true] %s19
      %22 = dma.hbm_to_vmem [thread:$0]  %s0, 512, %s20, [#allocation4]
    $region5: #{tpu_custom_call.1} parent=1 // pred_fallthru
      _
    // Predicated region
    $region6: #{tpu_custom_call.1} parent=1 // pred_check
      _
    $region7: #{tpu_custom_call.1} parent=1 // pred_check_branch
      %24 = sbr.rel (0) target = $region9
    $region8: #{tpu_custom_call.1} parent=1 // pred_region
      %s26 = ssub.s32 16384, 16384
      %27 = vsyncadd [#allocation6], %s26
      %s28 = sshll.u32 [#allocation5], 4
      %s29 = int_to_ptr.vmem [resolvable:$true] %s28
      %34 = dma.hbm_to_vmem [thread:$0]  %s1, 16384, %s29, [#allocation6], 256, 256, 16
    $region9: #{tpu_custom_call.1} parent=1 // pred_fallthru
      _
    // Predicated region
    $region10: #{tpu_custom_call.1} parent=1 // pred_check
      _
    $region11: #{tpu_custom_call.1} parent=1 // pred_check_branch
      %36 = sbr.rel (0) target = $region13
    $region12: #{tpu_custom_call.1} parent=1 // pred_region
      _
    $region13: #{tpu_custom_call.1} parent=1 // pred_fallthru
      _
    // Predicated region
    $region14: #{tpu_custom_call.1} parent=1 // pred_check
      _
    $region15: #{tpu_custom_call.1} parent=1 // pred_check_branch
      %38 = sbr.rel (0) target = $region17
    $region16: #{tpu_custom_call.1} parent=1 // pred_region
      _
    $region17: #{tpu_custom_call.1} parent=1 // pred_fallthru
      _
    // Predicated region
    $region18: #{tpu_custom_call.1} parent=1 // pred_check
      _
    $region19: #{tpu_custom_call.1} parent=1 // pred_check_branch
      %40 = sbr.rel (0) target = $region21
    $region20: #{tpu_custom_call.1} parent=1 // pred_region
      _
    $region21: #{tpu_custom_call.1} parent=1 // pred_fallthru
      _
    // Predicated region
    $region22: #{tpu_custom_call.1} parent=1 // pred_check
      _
    $region23: #{tpu_custom_call.1} parent=1 // pred_check_branch
      %42 = sbr.rel (0) target = $region25
    $region24: #{tpu_custom_call.1} parent=1 // pred_region
      %43 = dma.done [#allocation4], 512
    $region25: #{tpu_custom_call.1} parent=1 // pred_fallthru
      _
    // Predicated region
    $region26: #{tpu_custom_call.1} parent=1 // pred_check
      _
    $region27: #{tpu_custom_call.1} parent=1 // pred_check_branch
      %45 = sbr.rel (0) target = $region29
    $region28: #{tpu_custom_call.1} parent=1 // pred_region
      %46 = dma.done [#allocation6], 16384
    $region29: #{tpu_custom_call.1} parent=1 // pred_fallthru
      _
    %v47 = vld [vmem:[#allocation3] sm:$0xff]
    %v48 = vld [vmem:[#allocation3 + $0x8] sm:$0xff]
    %v49 = vld [vmem:[#allocation3 + $0x10] sm:$0xff]
    %v50 = vld [vmem:[#allocation3 + $0x18] sm:$0xff]
    %v51 = vpack.c.bf16 %v47, %v47
    %v52 = vpack.c.bf16 %v48, %v48
    %v53 = vpack.c.bf16 %v49, %v49
    %v54 = vpack.c.bf16 %v50, %v50
    %v55 = vld [vmem:[#allocation5] sm:$0xff]
    %v56 = vld [vmem:[#allocation5 + $0x8] sm:$0xff]
    %v57 = vld [vmem:[#allocation5 + $0x10] sm:$0xff]
    %v58 = vld [vmem:[#allocation5 + $0x18] sm:$0xff]
    %v59 = vld [vmem:[#allocation5 + $0x20] sm:$0xff]
    %v60 = vld [vmem:[#allocation5 + $0x28] sm:$0xff]
    %v61 = vld [vmem:[#allocation5 + $0x30] sm:$0xff]
    %v62 = vld [vmem:[#allocation5 + $0x38] sm:$0xff]
    %v63 = vld [vmem:[#allocation5 + $0x40] sm:$0xff]
    %v64 = vld [vmem:[#allocation5 + $0x48] sm:$0xff]
    %v65 = vld [vmem:[#allocation5 + $0x50] sm:$0xff]
    %v66 = vld [vmem:[#allocation5 + $0x58] sm:$0xff]
    %v67 = vld [vmem:[#allocation5 + $0x60] sm:$0xff]
    %v68 = vld [vmem:[#allocation5 + $0x68] sm:$0xff]
    %v69 = vld [vmem:[#allocation5 + $0x70] sm:$0xff]
    %v70 = vld [vmem:[#allocation5 + $0x78] sm:$0xff]
    %v71 = vld [vmem:[#allocation5 + $0x80] sm:$0xff]
    %v72 = vld [vmem:[#allocation5 + $0x88] sm:$0xff]
    %v73 = vld [vmem:[#allocation5 + $0x90] sm:$0xff]
    %v74 = vld [vmem:[#allocation5 + $0x98] sm:$0xff]
    %v75 = vld [vmem:[#allocation5 + $0xa0] sm:$0xff]
    %v76 = vld [vmem:[#allocation5 + $0xa8] sm:$0xff]
    %v77 = vld [vmem:[#allocation5 + $0xb0] sm:$0xff]
    %v78 = vld [vmem:[#allocation5 + $0xb8] sm:$0xff]
    %v79 = vld [vmem:[#allocation5 + $0xc0] sm:$0xff]
    %v80 = vld [vmem:[#allocation5 + $0xc8] sm:$0xff]
    %v81 = vld [vmem:[#allocation5 + $0xd0] sm:$0xff]
    %v82 = vld [vmem:[#allocation5 + $0xd8] sm:$0xff]
    %v83 = vld [vmem:[#allocation5 + $0xe0] sm:$0xff]
    %v84 = vld [vmem:[#allocation5 + $0xe8] sm:$0xff]
    %v85 = vld [vmem:[#allocation5 + $0xf0] sm:$0xff]
    %v86 = vld [vmem:[#allocation5 + $0xf8] sm:$0xff]
    %v87 = vld [vmem:[#allocation5 + $0x100] sm:$0xff]
    %v88 = vld [vmem:[#allocation5 + $0x108] sm:$0xff]
    %v89 = vld [vmem:[#allocation5 + $0x110] sm:$0xff]
    %v90 = vld [vmem:[#allocation5 + $0x118] sm:$0xff]
    %v91 = vld [vmem:[#allocation5 + $0x120] sm:$0xff]
    %v92 = vld [vmem:[#allocation5 + $0x128] sm:$0xff]
    %v93 = vld [vmem:[#allocation5 + $0x130] sm:$0xff]
    %v94 = vld [vmem:[#allocation5 + $0x138] sm:$0xff]
    %v95 = vld [vmem:[#allocation5 + $0x140] sm:$0xff]
    %v96 = vld [vmem:[#allocation5 + $0x148] sm:$0xff]
    %v97 = vld [vmem:[#allocation5 + $0x150] sm:$0xff]
    %v98 = vld [vmem:[#allocation5 + $0x158] sm:$0xff]
    %v99 = vld [vmem:[#allocation5 + $0x160] sm:$0xff]
    %v100 = vld [vmem:[#allocation5 + $0x168] sm:$0xff]
    %v101 = vld [vmem:[#allocation5 + $0x170] sm:$0xff]
    %v102 = vld [vmem:[#allocation5 + $0x178] sm:$0xff]
    %v103 = vld [vmem:[#allocation5 + $0x180] sm:$0xff]
    %v104 = vld [vmem:[#allocation5 + $0x188] sm:$0xff]
    %v105 = vld [vmem:[#allocation5 + $0x190] sm:$0xff]
    %v106 = vld [vmem:[#allocation5 + $0x198] sm:$0xff]
    %v107 = vld [vmem:[#allocation5 + $0x1a0] sm:$0xff]
    %v108 = vld [vmem:[#allocation5 + $0x1a8] sm:$0xff]
    %v109 = vld [vmem:[#allocation5 + $0x1b0] sm:$0xff]
    %v110 = vld [vmem:[#allocation5 + $0x1b8] sm:$0xff]
    %v111 = vld [vmem:[#allocation5 + $0x1c0] sm:$0xff]
    %v112 = vld [vmem:[#allocation5 + $0x1c8] sm:$0xff]
    %v113 = vld [vmem:[#allocation5 + $0x1d0] sm:$0xff]
    %v114 = vld [vmem:[#allocation5 + $0x1d8] sm:$0xff]
    %v115 = vld [vmem:[#allocation5 + $0x1e0] sm:$0xff]
    %v116 = vld [vmem:[#allocation5 + $0x1e8] sm:$0xff]
    %v117 = vld [vmem:[#allocation5 + $0x1f0] sm:$0xff]
    %v118 = vld [vmem:[#allocation5 + $0x1f8] sm:$0xff]
    %v119 = vld [vmem:[#allocation5 + $0x200] sm:$0xff]
    %v120 = vld [vmem:[#allocation5 + $0x208] sm:$0xff]
    %v121 = vld [vmem:[#allocation5 + $0x210] sm:$0xff]
    %v122 = vld [vmem:[#allocation5 + $0x218] sm:$0xff]
    %v123 = vld [vmem:[#allocation5 + $0x220] sm:$0xff]
    %v124 = vld [vmem:[#allocation5 + $0x228] sm:$0xff]
    %v125 = vld [vmem:[#allocation5 + $0x230] sm:$0xff]
    %v126 = vld [vmem:[#allocation5 + $0x238] sm:$0xff]
    %v127 = vld [vmem:[#allocation5 + $0x240] sm:$0xff]
    %v128 = vld [vmem:[#allocation5 + $0x248] sm:$0xff]
    %v129 = vld [vmem:[#allocation5 + $0x250] sm:$0xff]
    %v130 = vld [vmem:[#allocation5 + $0x258] sm:$0xff]
    %v131 = vld [vmem:[#allocation5 + $0x260] sm:$0xff]
    %v132 = vld [vmem:[#allocation5 + $0x268] sm:$0xff]
    %v133 = vld [vmem:[#allocation5 + $0x270] sm:$0xff]
    %v134 = vld [vmem:[#allocation5 + $0x278] sm:$0xff]
    %v135 = vld [vmem:[#allocation5 + $0x280] sm:$0xff]
    %v136 = vld [vmem:[#allocation5 + $0x288] sm:$0xff]
    %v137 = vld [vmem:[#allocation5 + $0x290] sm:$0xff]
    %v138 = vld [vmem:[#allocation5 + $0x298] sm:$0xff]
    %v139 = vld [vmem:[#allocation5 + $0x2a0] sm:$0xff]
    %v140 = vld [vmem:[#allocation5 + $0x2a8] sm:$0xff]
    %v141 = vld [vmem:[#allocation5 + $0x2b0] sm:$0xff]
    %v142 = vld [vmem:[#allocation5 + $0x2b8] sm:$0xff]
    %v143 = vld [vmem:[#allocation5 + $0x2c0] sm:$0xff]
    %v144 = vld [vmem:[#allocation5 + $0x2c8] sm:$0xff]
    %v145 = vld [vmem:[#allocation5 + $0x2d0] sm:$0xff]
    %v146 = vld [vmem:[#allocation5 + $0x2d8] sm:$0xff]
    %v147 = vld [vmem:[#allocation5 + $0x2e0] sm:$0xff]
    %v148 = vld [vmem:[#allocation5 + $0x2e8] sm:$0xff]
    %v149 = vld [vmem:[#allocation5 + $0x2f0] sm:$0xff]
    %v150 = vld [vmem:[#allocation5 + $0x2f8] sm:$0xff]
    %v151 = vld [vmem:[#allocation5 + $0x300] sm:$0xff]
    %v152 = vld [vmem:[#allocation5 + $0x308] sm:$0xff]
    %v153 = vld [vmem:[#allocation5 + $0x310] sm:$0xff]
    %v154 = vld [vmem:[#allocation5 + $0x318] sm:$0xff]
    %v155 = vld [vmem:[#allocation5 + $0x320] sm:$0xff]
    %v156 = vld [vmem:[#allocation5 + $0x328] sm:$0xff]
    %v157 = vld [vmem:[#allocation5 + $0x330] sm:$0xff]
    %v158 = vld [vmem:[#allocation5 + $0x338] sm:$0xff]
    %v159 = vld [vmem:[#allocation5 + $0x340] sm:$0xff]
    %v160 = vld [vmem:[#allocation5 + $0x348] sm:$0xff]
    %v161 = vld [vmem:[#allocation5 + $0x350] sm:$0xff]
    %v162 = vld [vmem:[#allocation5 + $0x358] sm:$0xff]
    %v163 = vld [vmem:[#allocation5 + $0x360] sm:$0xff]
    %v164 = vld [vmem:[#allocation5 + $0x368] sm:$0xff]
    %v165 = vld [vmem:[#allocation5 + $0x370] sm:$0xff]
    %v166 = vld [vmem:[#allocation5 + $0x378] sm:$0xff]
    %v167 = vld [vmem:[#allocation5 + $0x380] sm:$0xff]
    %v168 = vld [vmem:[#allocation5 + $0x388] sm:$0xff]
    %v169 = vld [vmem:[#allocation5 + $0x390] sm:$0xff]
    %v170 = vld [vmem:[#allocation5 + $0x398] sm:$0xff]
    %v171 = vld [vmem:[#allocation5 + $0x3a0] sm:$0xff]
    %v172 = vld [vmem:[#allocation5 + $0x3a8] sm:$0xff]
    %v173 = vld [vmem:[#allocation5 + $0x3b0] sm:$0xff]
    %v174 = vld [vmem:[#allocation5 + $0x3b8] sm:$0xff]
    %v175 = vld [vmem:[#allocation5 + $0x3c0] sm:$0xff]
    %v176 = vld [vmem:[#allocation5 + $0x3c8] sm:$0xff]
    %v177 = vld [vmem:[#allocation5 + $0x3d0] sm:$0xff]
    %v178 = vld [vmem:[#allocation5 + $0x3d8] sm:$0xff]
    %v179 = vld [vmem:[#allocation5 + $0x3e0] sm:$0xff]
    %v180 = vld [vmem:[#allocation5 + $0x3e8] sm:$0xff]
    %v181 = vld [vmem:[#allocation5 + $0x3f0] sm:$0xff]
    %v182 = vld [vmem:[#allocation5 + $0x3f8] sm:$0xff]
    %v183 = vld [vmem:[%s2] sm:$0xf]
    %v185 = vlaneseq
    %v186 = vshrl.u32 %v185, 7
    %v187 = vsub.s32 0, %v186
    %v188 = vrot.slane %v183, %v187
    %v189 = vlaneseq
    %v190 = vshrl.u32 %v189, 7
    %v191 = vsub.s32 1, %v190
    %v192 = vrot.slane %v183, %v191
    %v193 = vlaneseq
    %v194 = vshrl.u32 %v193, 7
    %v195 = vsub.s32 2, %v194
    %v196 = vrot.slane %v183, %v195
    %v197 = vlaneseq
    %v198 = vshrl.u32 %v197, 7
    %v199 = vsub.s32 3, %v198
    %v200 = vrot.slane %v183, %v199
    %v333 = vunpack.c.l.b16 %v55
    %v334 = vunpack.c.h.b16 %v55
    %v335 = vunpack.c.l.b16 %v56
    %v336 = vunpack.c.h.b16 %v56
    %v337 = vunpack.c.l.b16 %v57
    %v338 = vunpack.c.h.b16 %v57
    %v339 = vunpack.c.l.b16 %v58
    %v340 = vunpack.c.h.b16 %v58
    %v341 = vunpack.c.l.b16 %v59
    %v342 = vunpack.c.h.b16 %v59
    %v343 = vunpack.c.l.b16 %v60
    %v344 = vunpack.c.h.b16 %v60
    %v345 = vunpack.c.l.b16 %v61
    %v346 = vunpack.c.h.b16 %v61
    %v347 = vunpack.c.l.b16 %v62
    %v348 = vunpack.c.h.b16 %v62
    %v349 = vunpack.c.l.b16 %v63
    %v350 = vunpack.c.h.b16 %v63
    %v351 = vunpack.c.l.b16 %v64
    %v352 = vunpack.c.h.b16 %v64
    %v353 = vunpack.c.l.b16 %v65
    %v354 = vunpack.c.h.b16 %v65
    %v355 = vunpack.c.l.b16 %v66
    %v356 = vunpack.c.h.b16 %v66
    %v357 = vunpack.c.l.b16 %v67
    %v358 = vunpack.c.h.b16 %v67
    %v359 = vunpack.c.l.b16 %v68
    %v360 = vunpack.c.h.b16 %v68
    %v361 = vunpack.c.l.b16 %v69
    %v362 = vunpack.c.h.b16 %v69
    %v363 = vunpack.c.l.b16 %v70
    %v364 = vunpack.c.h.b16 %v70
    %v365 = vunpack.c.l.b16 %v71
    %v366 = vunpack.c.h.b16 %v71
    %v367 = vunpack.c.l.b16 %v72
    %v368 = vunpack.c.h.b16 %v72
    %v369 = vunpack.c.l.b16 %v73
    %v370 = vunpack.c.h.b16 %v73
    %v371 = vunpack.c.l.b16 %v74
    %v372 = vunpack.c.h.b16 %v74
    %v373 = vunpack.c.l.b16 %v75
    %v374 = vunpack.c.h.b16 %v75
    %v375 = vunpack.c.l.b16 %v76
    %v376 = vunpack.c.h.b16 %v76
    %v377 = vunpack.c.l.b16 %v77
    %v378 = vunpack.c.h.b16 %v77
    %v379 = vunpack.c.l.b16 %v78
    %v380 = vunpack.c.h.b16 %v78
    %v381 = vunpack.c.l.b16 %v79
    %v382 = vunpack.c.h.b16 %v79
    %v383 = vunpack.c.l.b16 %v80
    %v384 = vunpack.c.h.b16 %v80
    %v385 = vunpack.c.l.b16 %v81
    %v386 = vunpack.c.h.b16 %v81
    %v387 = vunpack.c.l.b16 %v82
    %v388 = vunpack.c.h.b16 %v82
    %v389 = vunpack.c.l.b16 %v83
    %v390 = vunpack.c.h.b16 %v83
    %v391 = vunpack.c.l.b16 %v84
    %v392 = vunpack.c.h.b16 %v84
    %v393 = vunpack.c.l.b16 %v85
    %v394 = vunpack.c.h.b16 %v85
    %v395 = vunpack.c.l.b16 %v86
    %v396 = vunpack.c.h.b16 %v86
    %v397 = vunpack.c.l.b16 %v87
    %v398 = vunpack.c.h.b16 %v87
    %v399 = vunpack.c.l.b16 %v88
    %v400 = vunpack.c.h.b16 %v88
    %v401 = vunpack.c.l.b16 %v89
    %v402 = vunpack.c.h.b16 %v89
    %v403 = vunpack.c.l.b16 %v90
    %v404 = vunpack.c.h.b16 %v90
    %v405 = vunpack.c.l.b16 %v91
    %v406 = vunpack.c.h.b16 %v91
    %v407 = vunpack.c.l.b16 %v92
    %v408 = vunpack.c.h.b16 %v92
    %v409 = vunpack.c.l.b16 %v93
    %v410 = vunpack.c.h.b16 %v93
    %v411 = vunpack.c.l.b16 %v94
    %v412 = vunpack.c.h.b16 %v94
    %v413 = vunpack.c.l.b16 %v95
    %v414 = vunpack.c.h.b16 %v95
    %v415 = vunpack.c.l.b16 %v96
    %v416 = vunpack.c.h.b16 %v96
    %v417 = vunpack.c.l.b16 %v97
    %v418 = vunpack.c.h.b16 %v97
    %v419 = vunpack.c.l.b16 %v98
    %v420 = vunpack.c.h.b16 %v98
    %v421 = vunpack.c.l.b16 %v99
    %v422 = vunpack.c.h.b16 %v99
    %v423 = vunpack.c.l.b16 %v100
    %v424 = vunpack.c.h.b16 %v100
    %v425 = vunpack.c.l.b16 %v101
    %v426 = vunpack.c.h.b16 %v101
    %v427 = vunpack.c.l.b16 %v102
    %v428 = vunpack.c.h.b16 %v102
    %v429 = vunpack.c.l.b16 %v103
    %v430 = vunpack.c.h.b16 %v103
    %v431 = vunpack.c.l.b16 %v104
    %v432 = vunpack.c.h.b16 %v104
    %v433 = vunpack.c.l.b16 %v105
    %v434 = vunpack.c.h.b16 %v105
    %v435 = vunpack.c.l.b16 %v106
    %v436 = vunpack.c.h.b16 %v106
    %v437 = vunpack.c.l.b16 %v107
    %v438 = vunpack.c.h.b16 %v107
    %v439 = vunpack.c.l.b16 %v108
    %v440 = vunpack.c.h.b16 %v108
    %v441 = vunpack.c.l.b16 %v109
    %v442 = vunpack.c.h.b16 %v109
    %v443 = vunpack.c.l.b16 %v110
    %v444 = vunpack.c.h.b16 %v110
    %v445 = vunpack.c.l.b16 %v111
    %v446 = vunpack.c.h.b16 %v111
    %v447 = vunpack.c.l.b16 %v112
    %v448 = vunpack.c.h.b16 %v112
    %v449 = vunpack.c.l.b16 %v113
    %v450 = vunpack.c.h.b16 %v113
    %v451 = vunpack.c.l.b16 %v114
    %v452 = vunpack.c.h.b16 %v114
    %v453 = vunpack.c.l.b16 %v115
    %v454 = vunpack.c.h.b16 %v115
    %v455 = vunpack.c.l.b16 %v116
    %v456 = vunpack.c.h.b16 %v116
    %v457 = vunpack.c.l.b16 %v117
    %v458 = vunpack.c.h.b16 %v117
    %v459 = vunpack.c.l.b16 %v118
    %v460 = vunpack.c.h.b16 %v118
    %v461 = vunpack.c.l.b16 %v119
    %v462 = vunpack.c.h.b16 %v119
    %v463 = vunpack.c.l.b16 %v120
    %v464 = vunpack.c.h.b16 %v120
    %v465 = vunpack.c.l.b16 %v121
    %v466 = vunpack.c.h.b16 %v121
    %v467 = vunpack.c.l.b16 %v122
    %v468 = vunpack.c.h.b16 %v122
    %v469 = vunpack.c.l.b16 %v123
    %v470 = vunpack.c.h.b16 %v123
    %v471 = vunpack.c.l.b16 %v124
    %v472 = vunpack.c.h.b16 %v124
    %v473 = vunpack.c.l.b16 %v125
    %v474 = vunpack.c.h.b16 %v125
    %v475 = vunpack.c.l.b16 %v126
    %v476 = vunpack.c.h.b16 %v126
    %v477 = vunpack.c.l.b16 %v127
    %v478 = vunpack.c.h.b16 %v127
    %v479 = vunpack.c.l.b16 %v128
    %v480 = vunpack.c.h.b16 %v128
    %v481 = vunpack.c.l.b16 %v129
    %v482 = vunpack.c.h.b16 %v129
    %v483 = vunpack.c.l.b16 %v130
    %v484 = vunpack.c.h.b16 %v130
    %v485 = vunpack.c.l.b16 %v131
    %v486 = vunpack.c.h.b16 %v131
    %v487 = vunpack.c.l.b16 %v132
    %v488 = vunpack.c.h.b16 %v132
    %v489 = vunpack.c.l.b16 %v133
    %v490 = vunpack.c.h.b16 %v133
    %v491 = vunpack.c.l.b16 %v134
    %v492 = vunpack.c.h.b16 %v134
    %v493 = vunpack.c.l.b16 %v135
    %v494 = vunpack.c.h.b16 %v135
    %v495 = vunpack.c.l.b16 %v136
    %v496 = vunpack.c.h.b16 %v136
    %v497 = vunpack.c.l.b16 %v137
    %v498 = vunpack.c.h.b16 %v137
    %v499 = vunpack.c.l.b16 %v138
    %v500 = vunpack.c.h.b16 %v138
    %v501 = vunpack.c.l.b16 %v139
    %v502 = vunpack.c.h.b16 %v139
    %v503 = vunpack.c.l.b16 %v140
    %v504 = vunpack.c.h.b16 %v140
    %v505 = vunpack.c.l.b16 %v141
    %v506 = vunpack.c.h.b16 %v141
    %v507 = vunpack.c.l.b16 %v142
    %v508 = vunpack.c.h.b16 %v142
    %v509 = vunpack.c.l.b16 %v143
    %v510 = vunpack.c.h.b16 %v143
    %v511 = vunpack.c.l.b16 %v144
    %v512 = vunpack.c.h.b16 %v144
    %v513 = vunpack.c.l.b16 %v145
    %v514 = vunpack.c.h.b16 %v145
    %v515 = vunpack.c.l.b16 %v146
    %v516 = vunpack.c.h.b16 %v146
    %v517 = vunpack.c.l.b16 %v147
    %v518 = vunpack.c.h.b16 %v147
    %v519 = vunpack.c.l.b16 %v148
    %v520 = vunpack.c.h.b16 %v148
    %v521 = vunpack.c.l.b16 %v149
    %v522 = vunpack.c.h.b16 %v149
    %v523 = vunpack.c.l.b16 %v150
    %v524 = vunpack.c.h.b16 %v150
    %v525 = vunpack.c.l.b16 %v151
    %v526 = vunpack.c.h.b16 %v151
    %v527 = vunpack.c.l.b16 %v152
    %v528 = vunpack.c.h.b16 %v152
    %v529 = vunpack.c.l.b16 %v153
    %v530 = vunpack.c.h.b16 %v153
    %v531 = vunpack.c.l.b16 %v154
    %v532 = vunpack.c.h.b16 %v154
    %v533 = vunpack.c.l.b16 %v155
    %v534 = vunpack.c.h.b16 %v155
    %v535 = vunpack.c.l.b16 %v156
    %v536 = vunpack.c.h.b16 %v156
    %v537 = vunpack.c.l.b16 %v157
    %v538 = vunpack.c.h.b16 %v157
    %v539 = vunpack.c.l.b16 %v158
    %v540 = vunpack.c.h.b16 %v158
    %v541 = vunpack.c.l.b16 %v159
    %v542 = vunpack.c.h.b16 %v159
    %v543 = vunpack.c.l.b16 %v160
    %v544 = vunpack.c.h.b16 %v160
    %v545 = vunpack.c.l.b16 %v161
    %v546 = vunpack.c.h.b16 %v161
    %v547 = vunpack.c.l.b16 %v162
    %v548 = vunpack.c.h.b16 %v162
    %v549 = vunpack.c.l.b16 %v163
    %v550 = vunpack.c.h.b16 %v163
    %v551 = vunpack.c.l.b16 %v164
    %v552 = vunpack.c.h.b16 %v164
    %v553 = vunpack.c.l.b16 %v165
    %v554 = vunpack.c.h.b16 %v165
    %v555 = vunpack.c.l.b16 %v166
    %v556 = vunpack.c.h.b16 %v166
    %v557 = vunpack.c.l.b16 %v167
    %v558 = vunpack.c.h.b16 %v167
    %v559 = vunpack.c.l.b16 %v168
    %v560 = vunpack.c.h.b16 %v168
    %v561 = vunpack.c.l.b16 %v169
    %v562 = vunpack.c.h.b16 %v169
    %v563 = vunpack.c.l.b16 %v170
    %v564 = vunpack.c.h.b16 %v170
    %v565 = vunpack.c.l.b16 %v171
    %v566 = vunpack.c.h.b16 %v171
    %v567 = vunpack.c.l.b16 %v172
    %v568 = vunpack.c.h.b16 %v172
    %v569 = vunpack.c.l.b16 %v173
    %v570 = vunpack.c.h.b16 %v173
    %v571 = vunpack.c.l.b16 %v174
    %v572 = vunpack.c.h.b16 %v174
    %v573 = vunpack.c.l.b16 %v175
    %v574 = vunpack.c.h.b16 %v175
    %v575 = vunpack.c.l.b16 %v176
    %v576 = vunpack.c.h.b16 %v176
    %v577 = vunpack.c.l.b16 %v177
    %v578 = vunpack.c.h.b16 %v177
    %v579 = vunpack.c.l.b16 %v178
    %v580 = vunpack.c.h.b16 %v178
    %v581 = vunpack.c.l.b16 %v179
    %v582 = vunpack.c.h.b16 %v179
    %v583 = vunpack.c.l.b16 %v180
    %v584 = vunpack.c.h.b16 %v180
    %v585 = vunpack.c.l.b16 %v181
    %v586 = vunpack.c.h.b16 %v181
    %v587 = vunpack.c.l.b16 %v182
    %v588 = vunpack.c.h.b16 %v182
    %v589 = vpack.c.b16 %v337, %v333
    %v590 = vpack.c.b16 %v338, %v334
    %v591 = vpack.c.b16 %v339, %v335
    %v592 = vpack.c.b16 %v340, %v336
    %v593 = vpack.c.b16 %v345, %v341
    %v594 = vpack.c.b16 %v346, %v342
    %v595 = vpack.c.b16 %v347, %v343
    %v596 = vpack.c.b16 %v348, %v344
    %v597 = vpack.c.b16 %v353, %v349
    %v598 = vpack.c.b16 %v354, %v350
    %v599 = vpack.c.b16 %v355, %v351
    %v600 = vpack.c.b16 %v356, %v352
    %v601 = vpack.c.b16 %v361, %v357
    %v602 = vpack.c.b16 %v362, %v358
    %v603 = vpack.c.b16 %v363, %v359
    %v604 = vpack.c.b16 %v364, %v360
    %v605 = vpack.c.b16 %v369, %v365
    %v606 = vpack.c.b16 %v370, %v366
    %v607 = vpack.c.b16 %v371, %v367
    %v608 = vpack.c.b16 %v372, %v368
    %v609 = vpack.c.b16 %v377, %v373
    %v610 = vpack.c.b16 %v378, %v374
    %v611 = vpack.c.b16 %v379, %v375
    %v612 = vpack.c.b16 %v380, %v376
    %v613 = vpack.c.b16 %v385, %v381
    %v614 = vpack.c.b16 %v386, %v382
    %v615 = vpack.c.b16 %v387, %v383
    %v616 = vpack.c.b16 %v388, %v384
    %v617 = vpack.c.b16 %v393, %v389
    %v618 = vpack.c.b16 %v394, %v390
    %v619 = vpack.c.b16 %v395, %v391
    %v620 = vpack.c.b16 %v396, %v392
    %v621 = vpack.c.b16 %v401, %v397
    %v622 = vpack.c.b16 %v402, %v398
    %v623 = vpack.c.b16 %v403, %v399
    %v624 = vpack.c.b16 %v404, %v400
    %v625 = vpack.c.b16 %v409, %v405
    %v626 = vpack.c.b16 %v410, %v406
    %v627 = vpack.c.b16 %v411, %v407
    %v628 = vpack.c.b16 %v412, %v408
    %v629 = vpack.c.b16 %v417, %v413
    %v630 = vpack.c.b16 %v418, %v414
    %v631 = vpack.c.b16 %v419, %v415
    %v632 = vpack.c.b16 %v420, %v416
    %v633 = vpack.c.b16 %v425, %v421
    %v634 = vpack.c.b16 %v426, %v422
    %v635 = vpack.c.b16 %v427, %v423
    %v636 = vpack.c.b16 %v428, %v424
    %v637 = vpack.c.b16 %v433, %v429
    %v638 = vpack.c.b16 %v434, %v430
    %v639 = vpack.c.b16 %v435, %v431
    %v640 = vpack.c.b16 %v436, %v432
    %v641 = vpack.c.b16 %v441, %v437
    %v642 = vpack.c.b16 %v442, %v438
    %v643 = vpack.c.b16 %v443, %v439
    %v644 = vpack.c.b16 %v444, %v440
    %v645 = vpack.c.b16 %v449, %v445
    %v646 = vpack.c.b16 %v450, %v446
    %v647 = vpack.c.b16 %v451, %v447
    %v648 = vpack.c.b16 %v452, %v448
    %v649 = vpack.c.b16 %v457, %v453
    %v650 = vpack.c.b16 %v458, %v454
    %v651 = vpack.c.b16 %v459, %v455
    %v652 = vpack.c.b16 %v460, %v456
    %v653 = vpack.c.b16 %v465, %v461
    %v654 = vpack.c.b16 %v466, %v462
    %v655 = vpack.c.b16 %v467, %v463
    %v656 = vpack.c.b16 %v468, %v464
    %v657 = vpack.c.b16 %v473, %v469
    %v658 = vpack.c.b16 %v474, %v470
    %v659 = vpack.c.b16 %v475, %v471
    %v660 = vpack.c.b16 %v476, %v472
    %v661 = vpack.c.b16 %v481, %v477
    %v662 = vpack.c.b16 %v482, %v478
    %v663 = vpack.c.b16 %v483, %v479
    %v664 = vpack.c.b16 %v484, %v480
    %v665 = vpack.c.b16 %v489, %v485
    %v666 = vpack.c.b16 %v490, %v486
    %v667 = vpack.c.b16 %v491, %v487
    %v668 = vpack.c.b16 %v492, %v488
    %v669 = vpack.c.b16 %v497, %v493
    %v670 = vpack.c.b16 %v498, %v494
    %v671 = vpack.c.b16 %v499, %v495
    %v672 = vpack.c.b16 %v500, %v496
    %v673 = vpack.c.b16 %v505, %v501
    %v674 = vpack.c.b16 %v506, %v502
    %v675 = vpack.c.b16 %v507, %v503
    %v676 = vpack.c.b16 %v508, %v504
    %v677 = vpack.c.b16 %v513, %v509
    %v678 = vpack.c.b16 %v514, %v510
    %v679 = vpack.c.b16 %v515, %v511
    %v680 = vpack.c.b16 %v516, %v512
    %v681 = vpack.c.b16 %v521, %v517
    %v682 = vpack.c.b16 %v522, %v518
    %v683 = vpack.c.b16 %v523, %v519
    %v684 = vpack.c.b16 %v524, %v520
    %v685 = vpack.c.b16 %v529, %v525
    %v686 = vpack.c.b16 %v530, %v526
    %v687 = vpack.c.b16 %v531, %v527
    %v688 = vpack.c.b16 %v532, %v528
    %v689 = vpack.c.b16 %v537, %v533
    %v690 = vpack.c.b16 %v538, %v534
    %v691 = vpack.c.b16 %v539, %v535
    %v692 = vpack.c.b16 %v540, %v536
    %v693 = vpack.c.b16 %v545, %v541
    %v694 = vpack.c.b16 %v546, %v542
    %v695 = vpack.c.b16 %v547, %v543
    %v696 = vpack.c.b16 %v548, %v544
    %v697 = vpack.c.b16 %v553, %v549
    %v698 = vpack.c.b16 %v554, %v550
    %v699 = vpack.c.b16 %v555, %v551
    %v700 = vpack.c.b16 %v556, %v552
    %v701 = vpack.c.b16 %v561, %v557
    %v702 = vpack.c.b16 %v562, %v558
    %v703 = vpack.c.b16 %v563, %v559
    %v704 = vpack.c.b16 %v564, %v560
    %v705 = vpack.c.b16 %v569, %v565
    %v706 = vpack.c.b16 %v570, %v566
    %v707 = vpack.c.b16 %v571, %v567
    %v708 = vpack.c.b16 %v572, %v568
    %v709 = vpack.c.b16 %v577, %v573
    %v710 = vpack.c.b16 %v578, %v574
    %v711 = vpack.c.b16 %v579, %v575
    %v712 = vpack.c.b16 %v580, %v576
    %v713 = vpack.c.b16 %v585, %v581
    %v714 = vpack.c.b16 %v586, %v582
    %v715 = vpack.c.b16 %v587, %v583
    %v716 = vpack.c.b16 %v588, %v584
    %845 = vmatprep.subr.bf16.mxu0 %v590
    %846 = vmatpush1.bf16.msra.mxu0 %v589
    %847 = vmatprep.subr.bf16.mxu0 %v594
    %848 = vmatpush1.bf16.msra.mxu0 %v593
    %849 = vmatprep.subr.bf16.mxu0 %v598
    %850 = vmatpush1.bf16.msra.mxu0 %v597
    %851 = vmatprep.subr.bf16.mxu0 %v602
    %852 = vmatpush1.bf16.msra.mxu0 %v601
    %853 = vmatprep.subr.bf16.mxu0 %v606
    %854 = vmatpush1.bf16.msra.mxu0 %v605
    %855 = vmatprep.subr.bf16.mxu0 %v610
    %856 = vmatpush1.bf16.msra.mxu0 %v609
    %857 = vmatprep.subr.bf16.mxu0 %v614
    %858 = vmatpush1.bf16.msra.mxu0 %v613
    %859 = vmatprep.subr.bf16.mxu0 %v618
    %860 = vmatpush1.bf16.msra.mxu0 %v617
    %861 = vmatprep.subr.bf16.mxu0 %v622
    %862 = vmatpush1.bf16.msra.mxu0 %v621
    %863 = vmatprep.subr.bf16.mxu0 %v626
    %864 = vmatpush1.bf16.msra.mxu0 %v625
    %865 = vmatprep.subr.bf16.mxu0 %v630
    %866 = vmatpush1.bf16.msra.mxu0 %v629
    %867 = vmatprep.subr.bf16.mxu0 %v634
    %868 = vmatpush1.bf16.msra.mxu0 %v633
    %869 = vmatprep.subr.bf16.mxu0 %v638
    %870 = vmatpush1.bf16.msra.mxu0 %v637
    %871 = vmatprep.subr.bf16.mxu0 %v642
    %872 = vmatpush1.bf16.msra.mxu0 %v641
    %873 = vmatprep.subr.bf16.mxu0 %v646
    %874 = vmatpush1.bf16.msra.mxu0 %v645
    %875 = vmatprep.subr.bf16.mxu0 %v650
    %876 = vmatpush1.bf16.msra.mxu0 %v649
    %877 = vmatprep.mubr.bf16.mxu0 %v52
    %878 = vmatmul.mubr.bf16.gmra.mrb[0].mxu0 %v51
    %v879 = vpop.f32.mrb[0].mxu0
    %v880 = vadd.f32 %v188, %v879
    %v881 = vpop.f32.mrb[0].mxu0
    %v882 = vadd.f32 %v192, %v881
    %v883 = vpop.f32.mrb[0].mxu0
    %v884 = vpop.f32.mrb[0].mxu0
    %885 = vdwg.mxu0
    %886 = vmatprep.subr.bf16.mxu0 %v654
    %887 = vmatpush1.bf16.msra.mxu0 %v653
    %888 = vmatprep.subr.bf16.mxu0 %v658
    %889 = vmatpush1.bf16.msra.mxu0 %v657
    %890 = vmatprep.subr.bf16.mxu0 %v662
    %891 = vmatpush1.bf16.msra.mxu0 %v661
    %892 = vmatprep.subr.bf16.mxu0 %v666
    %893 = vmatpush1.bf16.msra.mxu0 %v665
    %894 = vmatprep.subr.bf16.mxu0 %v670
    %895 = vmatpush1.bf16.msra.mxu0 %v669
    %896 = vmatprep.subr.bf16.mxu0 %v674
    %897 = vmatpush1.bf16.msra.mxu0 %v673
    %898 = vmatprep.subr.bf16.mxu0 %v678
    %899 = vmatpush1.bf16.msra.mxu0 %v677
    %900 = vmatprep.subr.bf16.mxu0 %v682
    %901 = vmatpush1.bf16.msra.mxu0 %v681
    %902 = vmatprep.subr.bf16.mxu0 %v686
    %903 = vmatpush1.bf16.msra.mxu0 %v685
    %904 = vmatprep.subr.bf16.mxu0 %v690
    %905 = vmatpush1.bf16.msra.mxu0 %v689
    %906 = vmatprep.subr.bf16.mxu0 %v694
    %907 = vmatpush1.bf16.msra.mxu0 %v693
    %908 = vmatprep.subr.bf16.mxu0 %v698
    %909 = vmatpush1.bf16.msra.mxu0 %v697
    %910 = vmatprep.subr.bf16.mxu0 %v702
    %911 = vmatpush1.bf16.msra.mxu0 %v701
    %912 = vmatprep.subr.bf16.mxu0 %v706
    %913 = vmatpush1.bf16.msra.mxu0 %v705
    %914 = vmatprep.subr.bf16.mxu0 %v710
    %915 = vmatpush1.bf16.msra.mxu0 %v709
    %916 = vmatprep.subr.bf16.mxu0 %v714
    %917 = vmatpush1.bf16.msra.mxu0 %v713
    %918 = vmatprep.mubr.bf16.mxu0 %v54
    %919 = vmatmul.mubr.bf16.gmra.mrb[0].mxu0 %v53
    %v920 = vpop.f32.mrb[0].mxu0
    %v921 = vadd.f32 %v880, %v920
    %v922 = vpop.f32.mrb[0].mxu0
    %v923 = vadd.f32 %v882, %v922
    %v924 = vpop.f32.mrb[0].mxu0
    %v925 = vpop.f32.mrb[0].mxu0
    %926 = vdwg.mxu0
    %927 = vmatprep.subr.bf16.mxu0 %v592
    %928 = vmatpush1.bf16.msra.mxu0 %v591
    %929 = vmatprep.subr.bf16.mxu0 %v596
    %930 = vmatpush1.bf16.msra.mxu0 %v595
    %931 = vmatprep.subr.bf16.mxu0 %v600
    %932 = vmatpush1.bf16.msra.mxu0 %v599
    %933 = vmatprep.subr.bf16.mxu0 %v604
    %934 = vmatpush1.bf16.msra.mxu0 %v603
    %935 = vmatprep.subr.bf16.mxu0 %v608
    %936 = vmatpush1.bf16.msra.mxu0 %v607
    %937 = vmatprep.subr.bf16.mxu0 %v612
    %938 = vmatpush1.bf16.msra.mxu0 %v611
    %939 = vmatprep.subr.bf16.mxu0 %v616
    %940 = vmatpush1.bf16.msra.mxu0 %v615
    %941 = vmatprep.subr.bf16.mxu0 %v620
    %942 = vmatpush1.bf16.msra.mxu0 %v619
    %943 = vmatprep.subr.bf16.mxu0 %v624
    %944 = vmatpush1.bf16.msra.mxu0 %v623
    %945 = vmatprep.subr.bf16.mxu0 %v628
    %946 = vmatpush1.bf16.msra.mxu0 %v627
    %947 = vmatprep.subr.bf16.mxu0 %v632
    %948 = vmatpush1.bf16.msra.mxu0 %v631
    %949 = vmatprep.subr.bf16.mxu0 %v636
    %950 = vmatpush1.bf16.msra.mxu0 %v635
    %951 = vmatprep.subr.bf16.mxu0 %v640
    %952 = vmatpush1.bf16.msra.mxu0 %v639
    %953 = vmatprep.subr.bf16.mxu0 %v644
    %954 = vmatpush1.bf16.msra.mxu0 %v643
    %955 = vmatprep.subr.bf16.mxu0 %v648
    %956 = vmatpush1.bf16.msra.mxu0 %v647
    %957 = vmatprep.subr.bf16.mxu0 %v652
    %958 = vmatpush1.bf16.msra.mxu0 %v651
    %959 = vmatprep.mubr.bf16.mxu0 %v52
    %960 = vmatmul.mubr.bf16.gmra.mrb[0].mxu0 %v51
    %v961 = vpop.f32.mrb[0].mxu0
    %v962 = vadd.f32 %v196, %v961
    %v963 = vpop.f32.mrb[0].mxu0
    %v964 = vadd.f32 %v200, %v963
    %v965 = vpop.f32.mrb[0].mxu0
    %v966 = vpop.f32.mrb[0].mxu0
    %967 = vdwg.mxu0
    %968 = vmatprep.subr.bf16.mxu0 %v656
    %969 = vmatpush1.bf16.msra.mxu0 %v655
    %970 = vmatprep.subr.bf16.mxu0 %v660
    %971 = vmatpush1.bf16.msra.mxu0 %v659
    %972 = vmatprep.subr.bf16.mxu0 %v664
    %973 = vmatpush1.bf16.msra.mxu0 %v663
    %974 = vmatprep.subr.bf16.mxu0 %v668
    %975 = vmatpush1.bf16.msra.mxu0 %v667
    %976 = vmatprep.subr.bf16.mxu0 %v672
    %977 = vmatpush1.bf16.msra.mxu0 %v671
    %978 = vmatprep.subr.bf16.mxu0 %v676
    %979 = vmatpush1.bf16.msra.mxu0 %v675
    %980 = vmatprep.subr.bf16.mxu0 %v680
    %981 = vmatpush1.bf16.msra.mxu0 %v679
    %982 = vmatprep.subr.bf16.mxu0 %v684
    %983 = vmatpush1.bf16.msra.mxu0 %v683
    %984 = vmatprep.subr.bf16.mxu0 %v688
    %985 = vmatpush1.bf16.msra.mxu0 %v687
    %986 = vmatprep.subr.bf16.mxu0 %v692
    %987 = vmatpush1.bf16.msra.mxu0 %v691
    %988 = vmatprep.subr.bf16.mxu0 %v696
    %989 = vmatpush1.bf16.msra.mxu0 %v695
    %990 = vmatprep.subr.bf16.mxu0 %v700
    %991 = vmatpush1.bf16.msra.mxu0 %v699
    %992 = vmatprep.subr.bf16.mxu0 %v704
    %993 = vmatpush1.bf16.msra.mxu0 %v703
    %994 = vmatprep.subr.bf16.mxu0 %v708
    %995 = vmatpush1.bf16.msra.mxu0 %v707
    %996 = vmatprep.subr.bf16.mxu0 %v712
    %997 = vmatpush1.bf16.msra.mxu0 %v711
    %998 = vmatprep.subr.bf16.mxu0 %v716
    %999 = vmatpush1.bf16.msra.mxu0 %v715
    %1000 = vmatprep.mubr.bf16.mxu0 %v54
    %1001 = vmatmul.mubr.bf16.gmra.mrb[0].mxu0 %v53
    %v1002 = vpop.f32.mrb[0].mxu0
    %v1003 = vadd.f32 %v962, %v1002
    %v1004 = vpop.f32.mrb[0].mxu0
    %v1005 = vadd.f32 %v964, %v1004
    %v1006 = vpop.f32.mrb[0].mxu0
    %v1007 = vpop.f32.mrb[0].mxu0
    %1008 = vdwg.mxu0
    %v1009 = vmax.f32 %v921, 0.0
    %v1010 = vmax.f32 %v923, 0.0
    %v1011 = vmax.f32 %v1003, 0.0
    %v1012 = vmax.f32 %v1005, 0.0
    %v1013 = vld [vmem:[%s3] sm:$0xf]
    %v1015 = vlaneseq
    %v1016 = vshrl.u32 %v1015, 7
    %v1017 = vsub.s32 0, %v1016
    %v1018 = vrot.slane %v1013, %v1017
    %v1019 = vlaneseq
    %v1020 = vshrl.u32 %v1019, 7
    %v1021 = vsub.s32 1, %v1020
    %v1022 = vrot.slane %v1013, %v1021
    %v1023 = vlaneseq
    %v1024 = vshrl.u32 %v1023, 7
    %v1025 = vsub.s32 2, %v1024
    %v1026 = vrot.slane %v1013, %v1025
    %v1027 = vlaneseq
    %v1028 = vshrl.u32 %v1027, 7
    %v1029 = vsub.s32 3, %v1028
    %v1030 = vrot.slane %v1013, %v1029
    %v1035 = vmul.f32 %v1009, %v1018
    %v1036 = vmul.f32 %v1010, %v1022
    %v1037 = vmul.f32 %v1011, %v1026
    %v1038 = vmul.f32 %v1012, %v1030
    %v1039 = vadd.f32 %v1035, %v1036
    %v1040 = vadd.f32 %v1039, %v1037
    %v1041 = vadd.f32 %v1040, %v1038
    %1042 = vadd.xlane.f32.xlu0 %v1041
    %v1043 = vpop.xlane.xlu0 %1042
    %s1044 = sld [smem:[#allocation2]]
    %v1045 = vstv %s1044
    %v1046 = vadd.f32 %v1043, %v1045
    %v1047 = vxor.u32 %v1046, 2147483648
    %v1048 = vmul.f32 %v1047, 1.442695
    %v1049 = vpow.pop %v1048
    %v1050 = vadd.f32 %v1049, 1.0
    %v1051 = vrcp.pop %v1050
    %v1052 = vmul.f32 1.0, %v1051
    %vm1053 = vcmask 7168
    %1054 = vst.msk [vmem:[%s5] sm:$0xff] %vm1053, %v1052
    // Predicated region
    $region30: #{tpu_custom_call.1} parent=1 // pred_check
      _
    $region31: #{tpu_custom_call.1} parent=1 // pred_check_branch
      %1056 = sbr.rel (0) target = $region33
    $region32: #{tpu_custom_call.1} parent=1 // pred_region
      _
    $region33: #{tpu_custom_call.1} parent=1 // pred_fallthru
      _
    // Predicated region
    $region34: #{tpu_custom_call.1} parent=1 // pred_check
      _
    $region35: #{tpu_custom_call.1} parent=1 // pred_check_branch
      %1058 = sbr.rel (0) target = $region37
    $region36: #{tpu_custom_call.1} parent=1 // pred_region
      _
    $region37: #{tpu_custom_call.1} parent=1 // pred_fallthru
      _
    %1059 = vsyncpa [#allocation4], 1
    %1060 = vsyncpa [#allocation6], 1

</llo_original>
